<compile_context>
chip_gen: v7x
topology: tpu7x:2x2x1
jax: 0.10.0
libtpu: 0.0.40
codegen_flags: <defaults>
</compile_context>

<pallas_src>
import functools

import jax
import jax.numpy as jnp
from jax.experimental import pallas as pl
from jax.experimental.pallas import tpu as pltpu

_MM_DTYPE = jnp.bfloat16          # set to jnp.float32 for bit-parity testing vs PyTorch


def _device_kind():
    try:
        return jax.devices()[0].device_kind.lower()
    except Exception:
        return ""


_KIND = _device_kind()
_IS_V5 = "v5" in _KIND
_IS_V7 = "v7" in _KIND

# v5e/v6e: 128 MiB physical VMEM -> 64 MiB scoped budget, large tiles.
# v7x: 64 MiB physical -> 48 MiB budget, smaller tiles, single-buffered value slab.
_VMEM_LIMIT = (48 if _IS_V7 else 64) * 1024 * 1024
_ROW_TILE_TARGET = 512 if _IS_V7 else 1024     # row tile for fused linear / LN kernels
_Q_TILE_TARGET = 256 if _IS_V7 else 512        # query tile for the deformable core
# one-hot aggregation dtype: bf16 on v6e/v7x (bf16 VALU, 2x fewer wide passes), f32 on v5e
_AGG_DTYPE = jnp.float32 if _IS_V5 else jnp.bfloat16
_LEVEL_ALIGN = 128                             # per-level slab padded to 128 columns


# --------------------------------------------------------------------------------------
# Small helpers
# --------------------------------------------------------------------------------------

def _round_up(x, m):
    return ((x + m - 1) // m) * m


def _pick_tile(n, target):
    return int(min(target, max(8, _round_up(n, 8))))


def _pad_axis(x, axis, multiple):
    sz = x.shape[axis]
    pad = _round_up(sz, multiple) - sz
    if pad == 0:
        return x
    widths = [(0, 0)] * x.ndim
    widths[axis] = (0, pad)
    return jnp.pad(x, widths)


def _cparams(*dims):
    return pltpu.CompilerParams(dimension_semantics=tuple(dims),
                                vmem_limit_bytes=_VMEM_LIMIT)


def _mm(x, w):
    """MXU matmul: bf16 operands (weights pre-cast at init), f32 accumulation."""
    return jnp.dot(x.astype(_MM_DTYPE), w.astype(_MM_DTYPE),
                   preferred_element_type=jnp.float32)


def _layernorm(x, g, b, eps):
    mu = jnp.mean(x, axis=-1, keepdims=True)
    var = jnp.mean((x - mu) ** 2, axis=-1, keepdims=True)
    return (x - mu) * jax.lax.rsqrt(var + eps) * g + b


# --------------------------------------------------------------------------------------
# Kernel 1: fused input projections  (value / sampling-offset / attention-logit linears)
# --------------------------------------------------------------------------------------

def _proj_compute(x, q, wv_ref, bv_ref, wq_ref, bq_ref, val_ref, ol_ref):
    # value projection uses src; offsets+logits use the (src + pos) query
    val_ref[...] = (_mm(x, wv_ref[...]) + bv_ref[...]).astype(val_ref.dtype)   # bf16 out
    ol_ref[...] = _mm(q, wq_ref[...]) + bq_ref[...]


def _proj_kernel_pos(src_ref, pos_ref, wv_ref, bv_ref, wq_ref, bq_ref, val_ref, ol_ref):
    x = src_ref[...]
    _proj_compute(x, x + pos_ref[...], wv_ref, bv_ref, wq_ref, bq_ref, val_ref, ol_ref)


def _proj_kernel_nopos(src_ref, wv_ref, bv_ref, wq_ref, bq_ref, val_ref, ol_ref):
    x = src_ref[...]
    _proj_compute(x, x, wv_ref, bv_ref, wq_ref, bq_ref, val_ref, ol_ref)


def fused_input_proj(src2d, pos2d, w_val, b_val, w_q, b_q):
    rows, c = src2d.shape
    n_out = w_q.shape[1]
    src_p = _pad_axis(src2d, 0, 8)
    rows_p = src_p.shape[0]
    tile = _pick_tile(rows_p, _ROW_TILE_TARGET)
    grid = (pl.cdiv(rows_p, tile),)

    row_c = pl.BlockSpec((tile, c), lambda r: (r, 0))
    row_o = pl.BlockSpec((tile, n_out), lambda r: (r, 0))

    def full(a):
        return pl.BlockSpec(a.shape, lambda r: (0, 0))

    weight_specs = [full(w_val), full(b_val), full(w_q), full(b_q)]
    weight_args = [w_val, b_val, w_q, b_q]
    if pos2d is not None:
        kern = _proj_kernel_pos
        in_specs = [row_c, row_c] + weight_specs
        args = [src_p, _pad_axis(pos2d, 0, 8)] + weight_args
    else:
        # no redundant second DMA of src when pos is None
        kern = _proj_kernel_nopos
        in_specs = [row_c] + weight_specs
        args = [src_p] + weight_args

    val, ol = pl.pallas_call(
        kern,
        out_shape=(jax.ShapeDtypeStruct((rows_p, c), _MM_DTYPE),       # value stays bf16
                   jax.ShapeDtypeStruct((rows_p, n_out), jnp.float32)),
        grid=grid,
        in_specs=in_specs,
        out_specs=(row_c, row_o),
        compiler_params=_cparams("parallel"),
    )(*args)
    if rows_p != rows:
        val, ol = val[:rows], ol[:rows]
    return val, ol


# --------------------------------------------------------------------------------------
# Kernel 2: deformable-attention sampling core
# --------------------------------------------------------------------------------------

def _deform_kernel(val_hbm, ol_ref, rp_ref, out_ref, vbuf, sem, *,
                   spatial_shapes, level_sizes_pad, n_heads, n_levels, n_points,
                   dh, agg_dtype):
    """Per-(batch, query-tile) core.

    val_hbm : [N, H, S_pad, dh] bf16 head-major values (HBM; manual single-buffered DMA)
    ol_ref  : [1, TQ, 4*H*L*P]  component-major: [off_d | off_x | off_y | attn logits]
    rp_ref  : [1, TQ, L*3]      reference points per level, (d, x, y) components
    out_ref : [1, TQ, C]        lane-dense bf16 output (all heads concatenated)
    vbuf    : [H, S_pad, dh]    VMEM scratch (resident value slab, single buffer)
    """
    b = pl.program_id(0)

    @pl.when(pl.program_id(1) == 0)
    def _load_value():                     # copy this batch's value slab once, reuse over q
        cp = pltpu.make_async_copy(val_hbm.at[b], vbuf, sem)
        cp.start()
        cp.wait()

    tq = out_ref.shape[1]
    lp = n_levels * n_points
    hlp = n_heads * lp
    base_x, base_y, base_att = hlp, 2 * hlp, 3 * hlp

    # per-level constants hoisted out of the head loop (JAX does not CSE broadcasted_iota)
    iotas, refs = [], []
    for lvl in range(n_levels):
        iotas.append(jax.lax.broadcasted_iota(jnp.int32, (tq, level_sizes_pad[lvl]), 1))
        refs.append((rp_ref[0, :, 3 * lvl:3 * lvl + 1],
                     rp_ref[0, :, 3 * lvl + 1:3 * lvl + 2],
                     rp_ref[0, :, 3 * lvl + 2:3 * lvl + 3]))

    head_out = []
    for h in range(n_heads):
        # softmax over (levels * points) for this head == F.softmax(attention_weights, -1)
        logits = ol_ref[0, :, base_att + h * lp: base_att + (h + 1) * lp]
        mx = jnp.max(logits, axis=-1, keepdims=True)
        ex = jnp.exp(logits - mx)
        attn = ex * pl.reciprocal(jnp.sum(ex, axis=-1, keepdims=True), approx=True)

        agg_parts = []
        for lvl in range(n_levels):
            d_sz, h_sz, w_sz = spatial_shapes[lvl]
            s_pad = level_sizes_pad[lvl]
            iota = iotas[lvl]
            ref_d, ref_x, ref_y = refs[lvl]
            k0 = (h * n_levels + lvl) * n_points
            od = ol_ref[0, :, k0:k0 + n_points]                         # [TQ, P] d-offsets
            ox = ol_ref[0, :, base_x + k0: base_x + k0 + n_points]      # [TQ, P] x-offsets
            oy = ol_ref[0, :, base_y + k0: base_y + k0 + n_points]      # [TQ, P] y-offsets
            ab = attn[:, lvl * n_points:(lvl + 1) * n_points]           # [TQ, P]
            agg = jnp.zeros((tq, s_pad), agg_dtype)
            for pt in range(n_points):
                a = ab[:, pt:pt + 1]
                # sampling location = reference + offset / normalizer, normalizer = (D, W, H)
                loc_d = ref_d + od[:, pt:pt + 1] * (1.0 / d_sz)
                loc_x = ref_x + ox[:, pt:pt + 1] * (1.0 / w_sz)
                loc_y = ref_y + oy[:, pt:pt + 1] * (1.0 / h_sz)
                # grid_sample(align_corners=False): voxel coordinate = loc * size - 0.5
                pd = loc_d * d_sz - 0.5
                ph = loc_y * h_sz - 0.5
                pw = loc_x * w_sz - 0.5
                d0f = jnp.floor(pd)
                h0f = jnp.floor(ph)
                w0f = jnp.floor(pw)
                fd = pd - d0f
                fh = ph - h0f
                fw = pw - w0f
                d0 = d0f.astype(jnp.int32)
                h0 = h0f.astype(jnp.int32)
                w0 = w0f.astype(jnp.int32)
                # 8 trilinear corners, zero padding outside (padding_mode='zeros')
                for dd in (0, 1):
                    wt_d = fd if dd else (1.0 - fd)
                    di = d0 + dd
                    ok_d = (di >= 0) & (di < d_sz)
                    for hh in (0, 1):
                        wt_h = fh if hh else (1.0 - fh)
                        hi = h0 + hh
                        ok_h = ok_d & (hi >= 0) & (hi < h_sz)
                        for ww in (0, 1):
                            wt_w = fw if ww else (1.0 - fw)
                            wi = w0 + ww
                            ok = ok_h & (wi >= 0) & (wi < w_sz)
                            wt = jnp.where(ok, wt_d * wt_h * wt_w * a, 0.0).astype(agg_dtype)
                            flat = di * (h_sz * w_sz) + hi * w_sz + wi
                            agg = agg + jnp.where(iota == flat, wt,
                                                  jnp.zeros((), agg_dtype))
            agg_parts.append(agg)
        # levels merged into ONE matmul per head (lane-aligned 128-padded level columns)
        agg_full = agg_parts[0] if n_levels == 1 else jnp.concatenate(agg_parts, axis=-1)
        val_h = vbuf[h]                                          # [S_pad, dh] leading-dim slice
        head_out.append(jnp.dot(agg_full.astype(_MM_DTYPE), val_h,
                                preferred_element_type=jnp.float32))
    out = head_out[0] if n_heads == 1 else jnp.concatenate(head_out, axis=-1)
    out_ref[0] = out.astype(out_ref.dtype)                       # single lane-dense store


def pallas_ms_deform_core(value_hm, ol, rp, spatial_shapes, level_sizes_pad,
                          n_heads, n_points):
    n, _, s_total, dh = value_hm.shape
    c = n_heads * dh
    lq = ol.shape[1]
    n_levels = len(spatial_shapes)

    ol_p = _pad_axis(ol, 1, 8)
    rp_p = _pad_axis(rp, 1, 8)
    lq_p = ol_p.shape[1]
    ol_w = ol_p.shape[2]
    rp_w = rp_p.shape[2]
    tq = _pick_tile(lq_p, _Q_TILE_TARGET)
    grid = (n, pl.cdiv(lq_p, tq))

    kern = functools.partial(
        _deform_kernel,
        spatial_shapes=tuple(tuple(int(v) for v in ss) for ss in spatial_shapes),
        level_sizes_pad=tuple(int(v) for v in level_sizes_pad),
        n_heads=n_heads, n_levels=n_levels, n_points=n_points,
        dh=dh, agg_dtype=_AGG_DTYPE)

    ce = pl.CostEstimate(
        flops=int(2 * n * lq * s_total * c
                  + 30 * n * lq * n_heads * n_points * sum(int(v) for v in level_sizes_pad)),
        transcendentals=int(n * lq * n_heads * n_levels * n_points),
        bytes_accessed=int(value_hm.size * value_hm.dtype.itemsize
                           + 4 * (ol.size + rp.size) + 2 * n * lq * c))

    out = pl.pallas_call(
        kern,
        out_shape=jax.ShapeDtypeStruct((n, lq_p, c), _MM_DTYPE),      # bf16 intermediate
        grid=grid,
        in_specs=[
            pl.BlockSpec(memory_space=pl.ANY),                  # value stays in HBM; manual DMA
            pl.BlockSpec((1, tq, ol_w), lambda b, q: (b, q, 0)),
            pl.BlockSpec((1, tq, rp_w), lambda b, q: (b, q, 0)),
        ],
        out_specs=pl.BlockSpec((1, tq, c), lambda b, q: (b, q, 0)),
        scratch_shapes=[pltpu.VMEM((n_heads, s_total, dh), value_hm.dtype),  # single buffer
                        pltpu.SemaphoreType.DMA],
        # q axis "arbitrary": megacore splits on batch only -> one value slab per core
        compiler_params=_cparams("parallel", "arbitrary"),
        cost_estimate=ce,
    )(value_hm, ol_p, rp_p)
    if lq_p != lq:
        out = out[:, :lq]
    return out


# --------------------------------------------------------------------------------------
# Kernel 3: fused out-projection + residual + LN1 + FFN + residual + LN2
# --------------------------------------------------------------------------------------

def _post_kernel(attn_ref, src_ref, wo_ref, bo_ref, g1_ref, be1_ref,
                 w1_ref, b1_ref, w2_ref, b2_ref, g2_ref, be2_ref,
                 out_ref, *, eps):
    x = src_ref[...]
    y = x + _mm(attn_ref[...], wo_ref[...]) + bo_ref[...]       # src + dropout1(attn_out@Wo)
    y = _layernorm(y, g1_ref[...], be1_ref[...], eps)           # norm1
    hdn = jnp.maximum(_mm(y, w1_ref[...]) + b1_ref[...], 0.0)   # linear1 + ReLU
    f = _mm(hdn, w2_ref[...]) + b2_ref[...]                     # linear2
    out_ref[...] = _layernorm(y + f, g2_ref[...], be2_ref[...], eps)   # norm2


def fused_post(attn2d, src2d, p, eps=1e-5):
    rows, c = src2d.shape
    attn_p = _pad_axis(attn2d, 0, 8)
    src_p = _pad_axis(src2d, 0, 8)
    rows_p = src_p.shape[0]
    tile = _pick_tile(rows_p, _ROW_TILE_TARGET)
    grid = (pl.cdiv(rows_p, tile),)
    row_c = pl.BlockSpec((tile, c), lambda r: (r, 0))

    def full(a):
        return pl.BlockSpec(a.shape, lambda r: (0, 0))

    out = pl.pallas_call(
        functools.partial(_post_kernel, eps=eps),
        out_shape=jax.ShapeDtypeStruct((rows_p, c), jnp.float32),
        grid=grid,
        in_specs=[row_c, row_c,
                  full(p["w_out"]), full(p["b_out"]), full(p["ln1_g"]), full(p["ln1_b"]),
                  full(p["w1"]), full(p["b1"]), full(p["w2"]), full(p["b2"]),
                  full(p["ln2_g"]), full(p["ln2_b"])],
        out_specs=row_c,
        compiler_params=_cparams("parallel"),
    )(attn_p, src_p, p["w_out"], p["b_out"], p["ln1_g"], p["ln1_b"],
      p["w1"], p["b1"], p["w2"], p["b2"], p["ln2_g"], p["ln2_b"])
    if rows_p != rows:
        out = out[:rows]
    return out


# --------------------------------------------------------------------------------------
# Plain-JAX glue reproducing the module's forward semantics
# --------------------------------------------------------------------------------------

def get_reference_points(spatial_shapes, valid_ratios):
    """Exact port of DeformableTransformerEncoder.get_reference_points."""
    ref_list = []
    for lvl, (d_sz, h_sz, w_sz) in enumerate(spatial_shapes):
        dl = jnp.linspace(0.5, d_sz - 0.5, d_sz, dtype=jnp.float32)
        yl = jnp.linspace(0.5, h_sz - 0.5, h_sz, dtype=jnp.float32)
        xl = jnp.linspace(0.5, w_sz - 0.5, w_sz, dtype=jnp.float32)
        ref_d, ref_y, ref_x = jnp.meshgrid(dl, yl, xl, indexing="ij")
        ref_d = ref_d.reshape(-1)[None] / (valid_ratios[:, None, lvl, 0] * d_sz)
        ref_y = ref_y.reshape(-1)[None] / (valid_ratios[:, None, lvl, 2] * h_sz)
        ref_x = ref_x.reshape(-1)[None] / (valid_ratios[:, None, lvl, 1] * w_sz)
        ref = jnp.stack((ref_d, ref_x, ref_y), -1)            # component order (d, x, y)
        ref_list.append(ref)
    reference_points = jnp.concatenate(ref_list, axis=1)                      # [N, Len, 3]
    reference_points = reference_points[:, :, None] * valid_ratios[:, None]   # [N, Len, L, 3]
    return reference_points


def _pad_value_levels(value, sizes, align=_LEVEL_ALIGN):
    """Zero-pad each per-level slab of `value` [N,S,C] to a multiple of `align`, so every
    level's column block in the one-hot aggregation matrix is lane-aligned."""
    padded = [_round_up(s, align) for s in sizes]
    if padded == list(sizes):
        return value, tuple(padded)
    n, _, c = value.shape
    pieces, off = [], 0
    for s, ps in zip(sizes, padded):
        pieces.append(value[:, off:off + s])
        if ps > s:
            pieces.append(jnp.zeros((n, ps - s, c), value.dtype))
        off += s
    return jnp.concatenate(pieces, axis=1), tuple(padded)


def ms_deform_attn_forward(p, src, pos, reference_points, spatial_shapes,
                           n_heads, n_points, padding_mask=None):
    n, lq, c = src.shape
    n_levels = len(spatial_shapes)
    dh = c // n_heads
    sizes = [d * h * w for (d, h, w) in spatial_shapes]

    src2d = src.reshape(n * lq, c)
    pos2d = None if pos is None else pos.reshape(n * lq, c)

    value2d, ol2d = fused_input_proj(src2d, pos2d, p["w_val"], p["b_val"],
                                     p["w_q"], p["b_q"])
    value = value2d.reshape(n, lq, c)                     # bf16
    ol = ol2d.reshape(n, lq, -1)                          # f32 [offsets | logits]
    if padding_mask is not None:
        value = jnp.where(padding_mask[..., None], jnp.zeros((), value.dtype), value)

    value, level_sizes_pad = _pad_value_levels(value, sizes)
    s_total = value.shape[1]
    # head-major layout: per-head value slab is a leading-dim slice (no lane relayout)
    value_hm = value.reshape(n, s_total, n_heads, dh).transpose(0, 2, 1, 3)

    rp = reference_points.reshape(n, lq, n_levels * 3)
    return pallas_ms_deform_core(value_hm, ol, rp, spatial_shapes,
                                 level_sizes_pad, n_heads, n_points)   # [N, Lq, C] bf16


def encoder_layer_forward(p, src, pos, reference_points, spatial_shapes,
                          n_heads, n_points, padding_mask=None):
    n, lq, c = src.shape
    attn_out = ms_deform_attn_forward(p, src, pos, reference_points, spatial_shapes,
                                      n_heads, n_points, padding_mask)
    out = fused_post(attn_out.reshape(n * lq, c), src.reshape(n * lq, c), p)
    return out.reshape(n, lq, c)


class DeformableTransformerEncoderPallas:
    """JAX/Pallas port of DeformableTransformerEncoder (CoTr DeTrans, inference)."""

    def __init__(self, num_layers, d_model, d_ffn, n_levels, n_heads, n_points, key):
        self.num_layers = num_layers
        self.n_heads = n_heads
        self.n_points = n_points
        layer_params = self._init_layer(key, d_model, d_ffn, n_levels, n_heads, n_points)
        # _get_clones uses copy.deepcopy -> every layer starts with identical parameters
        self.layers = [layer_params for _ in range(num_layers)]

    @staticmethod
    def _init_layer(key, d_model, d_ffn, n_levels, n_heads, n_points):
        ks = jax.random.split(key, 6)
        sc = 0.05

        def lin(k, fan_in, fan_out):
            kw, kb = jax.random.split(k)
            return (jax.random.normal(kw, (fan_in, fan_out), jnp.float32) * sc,
                    jax.random.normal(kb, (1, fan_out), jnp.float32) * sc)

        hlp = n_heads * n_levels * n_points
        p = {}
        # sampling-offset projection, reordered from PyTorch's interleaved (h,l,p,(d,x,y))
        # columns to component-major [all d | all x | all y] (same permutation must be
        # applied when importing real PyTorch weights).
        w_off, b_off = lin(ks[0], d_model, hlp * 3)
        perm = jnp.arange(hlp * 3).reshape(hlp, 3).T.reshape(-1)
        w_off, b_off = w_off[:, perm], b_off[:, perm]
        w_att, b_att = lin(ks[1], d_model, hlp)
        p["w_q"] = jnp.concatenate([w_off, w_att], axis=1).astype(_MM_DTYPE)
        p["b_q"] = jnp.concatenate([b_off, b_att], axis=1)
        w_val, p["b_val"] = lin(ks[2], d_model, d_model)
        p["w_val"] = w_val.astype(_MM_DTYPE)
        w_out, p["b_out"] = lin(ks[3], d_model, d_model)
        p["w_out"] = w_out.astype(_MM_DTYPE)
        w1, p["b1"] = lin(ks[4], d_model, d_ffn)
        p["w1"] = w1.astype(_MM_DTYPE)
        w2, p["b2"] = lin(ks[5], d_ffn, d_model)
        p["w2"] = w2.astype(_MM_DTYPE)
        p["ln1_g"] = jnp.ones((1, d_model), jnp.float32)
        p["ln1_b"] = jnp.zeros((1, d_model), jnp.float32)
        p["ln2_g"] = jnp.ones((1, d_model), jnp.float32)
        p["ln2_b"] = jnp.zeros((1, d_model), jnp.float32)
        return p

    def forward(self, src, spatial_shapes, level_start_index, valid_ratios,
                pos=None, padding_mask=None):
        del level_start_index  # recomputed statically from the (static) spatial_shapes
        reference_points = get_reference_points(spatial_shapes, valid_ratios)
        output = src
        for p in self.layers:
            output = encoder_layer_forward(p, output, pos, reference_points,
                                           spatial_shapes, self.n_heads,
                                           self.n_points, padding_mask)
        return output


# --------------------------------------------------------------------------------------
# Demo
# --------------------------------------------------------------------------------------

if __name__ == "__main__":
    key = jax.random.PRNGKey(0)
    k_src, k_pos, k_vr, k_par = jax.random.split(key, 4)

    N = 2
    d_model = 32
    n_heads = 4
    n_points = 2
    d_ffn = 64
    num_layers = 2
    spatial_shapes = ((2, 4, 4), (2, 2, 2))                   # per level (D, H, W)
    n_levels = len(spatial_shapes)
    seq_len = sum(d * h * w for (d, h, w) in spatial_shapes)  # 32 + 8 = 40
    level_start_index = (0, spatial_shapes[0][0] * spatial_shapes[0][1] * spatial_shapes[0][2])

    src = jax.random.normal(k_src, (N, seq_len, d_model), jnp.float32)
    pos = jax.random.normal(k_pos, (N, seq_len, d_model), jnp.float32)
    valid_ratios = 0.85 + 0.15 * jax.random.uniform(k_vr, (N, n_levels, 3), jnp.float32)

    encoder = DeformableTransformerEncoderPallas(
        num_layers, d_model, d_ffn, n_levels, n_heads, n_points, k_par)

    out = encoder.forward(src, spatial_shapes, level_start_index, valid_ratios,
                          pos=pos, padding_mask=None)
    out = jax.block_until_ready(out)
    assert out.shape == (N, seq_len, d_model)
    assert bool(jnp.all(jnp.isfinite(out)))
    print("KERNEL_OK")
</pallas_src>

<mosaic_0001>
module attributes {stable_mosaic.version = 11 : i64} {
  func.func @_proj_kernel_pos(%arg0: i32, %arg1: memref<80x32xf32, #tpu.memory_space<vmem>>, %arg2: memref<80x32xf32, #tpu.memory_space<vmem>>, %arg3: memref<32x32xbf16, #tpu.memory_space<vmem>>, %arg4: memref<1x32xf32, #tpu.memory_space<vmem>>, %arg5: memref<32x64xbf16, #tpu.memory_space<vmem>>, %arg6: memref<1x64xf32, #tpu.memory_space<vmem>>, %arg7: memref<80x32xbf16, #tpu.memory_space<vmem>>, %arg8: memref<80x64xf32, #tpu.memory_space<vmem>>) attributes {dimension_semantics = [#tpu.dimension_semantics<parallel>], iteration_bounds = array<i64: 1>, scalar_prefetch = 0 : i64, scratch_operands = 0 : i64, tpu.core_type = #tpu.core_type<tc>, window_params = [{transform_indices = @transform_0, window_bounds = array<i64: 80, 32>}, {transform_indices = @transform_1, window_bounds = array<i64: 80, 32>}, {pipeline_mode = #tpu.pipeline_mode<synchronous>, transform_indices = @transform_2, window_bounds = array<i64: 32, 32>}, {pipeline_mode = #tpu.pipeline_mode<synchronous>, transform_indices = @transform_3, window_bounds = array<i64: 1, 32>}, {pipeline_mode = #tpu.pipeline_mode<synchronous>, transform_indices = @transform_4, window_bounds = array<i64: 32, 64>}, {pipeline_mode = #tpu.pipeline_mode<synchronous>, transform_indices = @transform_5, window_bounds = array<i64: 1, 64>}, {transform_indices = @transform_6, window_bounds = array<i64: 80, 32>}, {transform_indices = @transform_7, window_bounds = array<i64: 80, 64>}]} {
    %c0 = arith.constant 0 : index
    %c0_0 = arith.constant 0 : index
    %0 = vector.load %arg1[%c0, %c0_0] : memref<80x32xf32, #tpu.memory_space<vmem>>, vector<80x32xf32>
    %c0_1 = arith.constant 0 : index
    %c0_2 = arith.constant 0 : index
    %1 = vector.load %arg2[%c0_1, %c0_2] : memref<80x32xf32, #tpu.memory_space<vmem>>, vector<80x32xf32>
    %2 = arith.addf %0, %1 : vector<80x32xf32>
    %c0_3 = arith.constant 0 : index
    %c0_4 = arith.constant 0 : index
    %3 = vector.load %arg3[%c0_3, %c0_4] : memref<32x32xbf16, #tpu.memory_space<vmem>>, vector<32x32xbf16>
    %4 = arith.truncf %0 : vector<80x32xf32> to vector<80x32xbf16>
    %cst = arith.constant dense<0.000000e+00> : vector<80x32xf32>
    %5 = tpu.matmul %4, %3, %cst {dimension_numbers = #tpu.dot_dimension_numbers<[1], [0], [0], [1], [0, 0, 1, 1], [], []>} : vector<80x32xbf16>, vector<32x32xbf16>, vector<80x32xf32> -> vector<80x32xf32>
    %c0_5 = arith.constant 0 : index
    %c0_6 = arith.constant 0 : index
    %6 = vector.load %arg4[%c0_5, %c0_6] : memref<1x32xf32, #tpu.memory_space<vmem>>, vector<1x32xf32>
    %7 = vector.broadcast %6 : vector<1x32xf32> to vector<80x32xf32>
    %8 = arith.addf %5, %7 : vector<80x32xf32>
    %9 = arith.truncf %8 : vector<80x32xf32> to vector<80x32xbf16>
    %c0_7 = arith.constant 0 : index
    %c0_8 = arith.constant 0 : index
    %10 = vector.load %arg7[%c0_7, %c0_8] : memref<80x32xbf16, #tpu.memory_space<vmem>>, vector<80x32xbf16>
    tpu.vector_store %arg7[%c0_7, %c0_8], %9 {strides = array<i32>} : memref<80x32xbf16, #tpu.memory_space<vmem>>, vector<80x32xbf16>,
    %c0_9 = arith.constant 0 : index
    %c0_10 = arith.constant 0 : index
    %11 = vector.load %arg5[%c0_9, %c0_10] : memref<32x64xbf16, #tpu.memory_space<vmem>>, vector<32x64xbf16>
    %12 = arith.truncf %2 : vector<80x32xf32> to vector<80x32xbf16>
    %cst_11 = arith.constant dense<0.000000e+00> : vector<80x64xf32>
    %13 = tpu.matmul %12, %11, %cst_11 {dimension_numbers = #tpu.dot_dimension_numbers<[1], [0], [0], [1], [0, 0, 1, 1], [], []>} : vector<80x32xbf16>, vector<32x64xbf16>, vector<80x64xf32> -> vector<80x64xf32>
    %c0_12 = arith.constant 0 : index
    %c0_13 = arith.constant 0 : index
    %14 = vector.load %arg6[%c0_12, %c0_13] : memref<1x64xf32, #tpu.memory_space<vmem>>, vector<1x64xf32>
    %15 = vector.broadcast %14 : vector<1x64xf32> to vector<80x64xf32>
    %16 = arith.addf %13, %15 : vector<80x64xf32>
    %c0_14 = arith.constant 0 : index
    %c0_15 = arith.constant 0 : index
    %17 = vector.load %arg8[%c0_14, %c0_15] : memref<80x64xf32, #tpu.memory_space<vmem>>, vector<80x64xf32>
    tpu.vector_store %arg8[%c0_14, %c0_15], %16 {strides = array<i32>} : memref<80x64xf32, #tpu.memory_space<vmem>>, vector<80x64xf32>,
    return
  }
  func.func @transform_0(%arg0: i32) -> (i32, i32) {
    %c0_i32 = arith.constant 0 : i32
    %c0_i32_0 = arith.constant 0 : i32
    return %arg0, %c0_i32 : i32, i32
  }
  func.func @transform_1(%arg0: i32) -> (i32, i32) {
    %c0_i32 = arith.constant 0 : i32
    %c0_i32_0 = arith.constant 0 : i32
    return %arg0, %c0_i32 : i32, i32
  }
  func.func @transform_2(%arg0: i32) -> (i32, i32) {
    %c0_i32 = arith.constant 0 : i32
    %c0_i32_0 = arith.constant 0 : i32
    %c0_i32_1 = arith.constant 0 : i32
    return %c0_i32, %c0_i32_0 : i32, i32
  }
  func.func @transform_3(%arg0: i32) -> (i32, i32) {
    %c0_i32 = arith.constant 0 : i32
    %c0_i32_0 = arith.constant 0 : i32
    %c0_i32_1 = arith.constant 0 : i32
    return %c0_i32, %c0_i32_0 : i32, i32
  }
  func.func @transform_4(%arg0: i32) -> (i32, i32) {
    %c0_i32 = arith.constant 0 : i32
    %c0_i32_0 = arith.constant 0 : i32
    %c0_i32_1 = arith.constant 0 : i32
    return %c0_i32, %c0_i32_0 : i32, i32
  }
  func.func @transform_5(%arg0: i32) -> (i32, i32) {
    %c0_i32 = arith.constant 0 : i32
    %c0_i32_0 = arith.constant 0 : i32
    %c0_i32_1 = arith.constant 0 : i32
    return %c0_i32, %c0_i32_0 : i32, i32
  }
  func.func @transform_6(%arg0: i32) -> (i32, i32) {
    %c0_i32 = arith.constant 0 : i32
    %c0_i32_0 = arith.constant 0 : i32
    return %arg0, %c0_i32 : i32, i32
  }
  func.func @transform_7(%arg0: i32) -> (i32, i32) {
    %c0_i32 = arith.constant 0 : i32
    %c0_i32_0 = arith.constant 0 : i32
    return %arg0, %c0_i32 : i32, i32
  }
}

</mosaic_0001>

<llo_original>
// kernel: tpu_custom_call.1
$region0: #{tpu_custom_call.1}
  #allocation0 [shape = 'u32[]', space=smem, size = 0x4, offset = 0x4, fixed_abs, tag = 'smem constant byte address 0x4 - core index']
  #allocation1 [shape = 'u32[144,128]{1,0:T(1,128)}', space=vmem, size = 0x12000, scoped, tag = 'internal scratch']
  %s0 = inlined_call_operand.hbm [shape: f32[80,32], index: 0, kind: input, shape index: {}]
  %s1 = inlined_call_operand.hbm [shape: f32[80,32], index: 1, kind: input, shape index: {}]
  %s2 = inlined_call_operand.hbm [shape: bf16[32,32], index: 2, kind: input, shape index: {}]
  %s3 = inlined_call_operand.hbm [shape: f32[1,32], index: 3, kind: input, shape index: {}]
  %s4 = inlined_call_operand.hbm [shape: bf16[32,64], index: 4, kind: input, shape index: {}]
  %s5 = inlined_call_operand.hbm [shape: f32[1,64], index: 5, kind: input, shape index: {}]
  %s6 = inlined_call_operand.hbm [shape: bf16[80,32], index: 6, kind: output, shape index: {0}]
  %s7 = inlined_call_operand.hbm [shape: f32[80,64], index: 7, kind: output, shape index: {1}]
  %8 = xla_tuple %s6, %s7
  %s9 = sld [smem:[#allocation0]]
  $region66: #{tpu_custom_call.1} parent=0
    _
  %s11 = ssub.s32 1, %s9
  %s12 = scalar_select 0, %s11, %s9
  $region1: #{tpu_custom_call.1} parent=0
    #allocation2 [shape = 'u8[40960]{0}', space=vmem, size = 0xa000, scoped, tag = 'input window, operand 0, single buffered']
    #allocation3 [shape = 's32[1]{0}', space=sflag, size = 0x4, scoped, tag = 'scoped memory for tpu_custom_call.1']
    #allocation4 [shape = 's32[1]{0}', space=sflag, size = 0x4, scoped, tag = 'scoped memory for tpu_custom_call.1']
    #allocation5 [shape = 'u8[40960]{0}', space=vmem, size = 0xa000, scoped, tag = 'input window, operand 1, single buffered']
    #allocation6 [shape = 's32[1]{0}', space=sflag, size = 0x4, scoped, tag = 'scoped memory for tpu_custom_call.1']
    #allocation7 [shape = 'u8[8192]{0}', space=vmem, size = 0x2000, scoped, tag = 'input window, operand 2, single buffered']
    #allocation8 [shape = 'u8[512]{0}', space=vmem, size = 0x400, scoped, tag = 'input window, operand 3, single buffered']
    #allocation9 [shape = 's32[1]{0}', space=sflag, size = 0x4, scoped, tag = 'scoped memory for tpu_custom_call.1']
    #allocation10 [shape = 'u8[8192]{0}', space=vmem, size = 0x2000, scoped, tag = 'input window, operand 4, single buffered']
    #allocation11 [shape = 'u8[512]{0}', space=vmem, size = 0x400, scoped, tag = 'input window, operand 5, single buffered']
    #allocation12 [shape = 's32[1]{0}', space=sflag, size = 0x4, scoped, tag = 'scoped memory for tpu_custom_call.1']
    #allocation13 [shape = 'u8[20480]{0}', space=vmem, size = 0x5000, scoped, tag = 'output window, operand 0, single buffered']
    #allocation14 [shape = 'u8[40960]{0}', space=vmem, size = 0xa000, scoped, tag = 'output window, operand 1, single buffered']
    #allocation15 [shape = 's32[1]{0}', space=sflag, size = 0x4, scoped, tag = 'scoped memory for tpu_custom_call.1']
    %13 = vsyncpa [#allocation3], 0
    %14 = vsyncpa [#allocation6], 0
    %15 = vsyncpa [#allocation9], 0
    %16 = vsyncpa [#allocation12], 0
    %17 = vsyncpa [#allocation4], 0
    %18 = vsyncpa [#allocation15], 0
    // Predicated region
    $region2: #{tpu_custom_call.1} parent=1 // pred_check
      _
    $region3: #{tpu_custom_call.1} parent=1 // pred_check_branch
      %20 = sbr.rel (0) target = $region5
    $region4: #{tpu_custom_call.1} parent=1 // pred_region
      %s22 = ssub.s32 1280, 1280
      %23 = vsyncadd [#allocation3], %s22
      %s24 = sshll.u32 [#allocation2], 4
      %s25 = int_to_ptr.vmem [resolvable:$true] %s24
      %30 = dma.hbm_to_vmem [thread:$0]  %s0, 1280, %s25, [#allocation3], 128, 128, 8
    $region5: #{tpu_custom_call.1} parent=1 // pred_fallthru
      _
    // Predicated region
    $region6: #{tpu_custom_call.1} parent=1 // pred_check
      _
    $region7: #{tpu_custom_call.1} parent=1 // pred_check_branch
      %32 = sbr.rel (0) target = $region9
    $region8: #{tpu_custom_call.1} parent=1 // pred_region
      %s34 = ssub.s32 1280, 1280
      %35 = vsyncadd [#allocation6], %s34
      %s36 = sshll.u32 [#allocation5], 4
      %s37 = int_to_ptr.vmem [resolvable:$true] %s36
      %42 = dma.hbm_to_vmem [thread:$0]  %s1, 1280, %s37, [#allocation6], 128, 128, 8
    $region9: #{tpu_custom_call.1} parent=1 // pred_fallthru
      _
    // Predicated region
    $region10: #{tpu_custom_call.1} parent=1 // pred_check
      _
    $region11: #{tpu_custom_call.1} parent=1 // pred_check_branch
      %44 = sbr.rel (0) target = $region13
    $region12: #{tpu_custom_call.1} parent=1 // pred_region
      %s46 = ssub.s32 256, 256
      %47 = vsyncadd [#allocation6], %s46
      %s48 = sshll.u32 [#allocation7], 4
      %s49 = int_to_ptr.vmem [resolvable:$true] %s48
      %54 = dma.hbm_to_vmem [thread:$0]  %s2, 256, %s49, [#allocation6], 64, 64, 4
    $region13: #{tpu_custom_call.1} parent=1 // pred_fallthru
      _
    // Predicated region
    $region14: #{tpu_custom_call.1} parent=1 // pred_check
      _
    $region15: #{tpu_custom_call.1} parent=1 // pred_check_branch
      %56 = sbr.rel (0) target = $region17
    $region16: #{tpu_custom_call.1} parent=1 // pred_region
      %s58 = ssub.s32 16, 16
      %59 = vsyncadd [#allocation9], %s58
      %s61 = sshll.u32 [#allocation8], 4
      %s62 = int_to_ptr.vmem [resolvable:$true] %s61
      %64 = dma.hbm_to_vmem [thread:$0]  %s3, 16, %s62, [#allocation9]
    $region17: #{tpu_custom_call.1} parent=1 // pred_fallthru
      _
    // Predicated region
    $region18: #{tpu_custom_call.1} parent=1 // pred_check
      _
    $region19: #{tpu_custom_call.1} parent=1 // pred_check_branch
      %66 = sbr.rel (0) target = $region21
    $region20: #{tpu_custom_call.1} parent=1 // pred_region
      %s68 = ssub.s32 256, 256
      %69 = vsyncadd [#allocation9], %s68
      %s70 = sshll.u32 [#allocation10], 4
      %s71 = int_to_ptr.vmem [resolvable:$true] %s70
      %76 = dma.hbm_to_vmem [thread:$0]  %s4, 256, %s71, [#allocation9], 64, 64, 4
    $region21: #{tpu_custom_call.1} parent=1 // pred_fallthru
      _
    // Predicated region
    $region22: #{tpu_custom_call.1} parent=1 // pred_check
      _
    $region23: #{tpu_custom_call.1} parent=1 // pred_check_branch
      %78 = sbr.rel (0) target = $region25
    $region24: #{tpu_custom_call.1} parent=1 // pred_region
      %s80 = ssub.s32 16, 16
      %81 = vsyncadd [#allocation12], %s80
      %s83 = sshll.u32 [#allocation11], 4
      %s84 = int_to_ptr.vmem [resolvable:$true] %s83
      %86 = dma.hbm_to_vmem [thread:$0]  %s5, 16, %s84, [#allocation12]
    $region25: #{tpu_custom_call.1} parent=1 // pred_fallthru
      _
    // Predicated region
    $region26: #{tpu_custom_call.1} parent=1 // pred_check
      _
    $region27: #{tpu_custom_call.1} parent=1 // pred_check_branch
      %88 = sbr.rel (0) target = $region29
    $region28: #{tpu_custom_call.1} parent=1 // pred_region
      %89 = dma.done [#allocation3], 1280
    $region29: #{tpu_custom_call.1} parent=1 // pred_fallthru
      _
    // Predicated region
    $region30: #{tpu_custom_call.1} parent=1 // pred_check
      _
    $region31: #{tpu_custom_call.1} parent=1 // pred_check_branch
      %91 = sbr.rel (0) target = $region33
    $region32: #{tpu_custom_call.1} parent=1 // pred_region
      %92 = dma.done [#allocation6], 1280
    $region33: #{tpu_custom_call.1} parent=1 // pred_fallthru
      _
    // Predicated region
    $region34: #{tpu_custom_call.1} parent=1 // pred_check
      _
    $region35: #{tpu_custom_call.1} parent=1 // pred_check_branch
      %94 = sbr.rel (0) target = $region37
    $region36: #{tpu_custom_call.1} parent=1 // pred_region
      %95 = dma.done [#allocation6], 256
    $region37: #{tpu_custom_call.1} parent=1 // pred_fallthru
      _
    // Predicated region
    $region38: #{tpu_custom_call.1} parent=1 // pred_check
      _
    $region39: #{tpu_custom_call.1} parent=1 // pred_check_branch
      %97 = sbr.rel (0) target = $region41
    $region40: #{tpu_custom_call.1} parent=1 // pred_region
      %98 = dma.done [#allocation9], 16
    $region41: #{tpu_custom_call.1} parent=1 // pred_fallthru
      _
    // Predicated region
    $region42: #{tpu_custom_call.1} parent=1 // pred_check
      _
    $region43: #{tpu_custom_call.1} parent=1 // pred_check_branch
      %100 = sbr.rel (0) target = $region45
    $region44: #{tpu_custom_call.1} parent=1 // pred_region
      %101 = dma.done [#allocation9], 256
    $region45: #{tpu_custom_call.1} parent=1 // pred_fallthru
      _
    // Predicated region
    $region46: #{tpu_custom_call.1} parent=1 // pred_check
      _
    $region47: #{tpu_custom_call.1} parent=1 // pred_check_branch
      %103 = sbr.rel (0) target = $region49
    $region48: #{tpu_custom_call.1} parent=1 // pred_region
      %104 = dma.done [#allocation12], 16
    $region49: #{tpu_custom_call.1} parent=1 // pred_fallthru
      _
    %v106 = vld [vmem:[#allocation2] sm:$0xff]
    %v107 = vld [vmem:[#allocation2 + $0x8] sm:$0xff]
    %v108 = vld [vmem:[#allocation2 + $0x10] sm:$0xff]
    %v109 = vld [vmem:[#allocation2 + $0x18] sm:$0xff]
    %v110 = vld [vmem:[#allocation2 + $0x20] sm:$0xff]
    %v111 = vld [vmem:[#allocation2 + $0x28] sm:$0xff]
    %v112 = vld [vmem:[#allocation2 + $0x30] sm:$0xff]
    %v113 = vld [vmem:[#allocation2 + $0x38] sm:$0xff]
    %v114 = vld [vmem:[#allocation2 + $0x40] sm:$0xff]
    %v115 = vld [vmem:[#allocation2 + $0x48] sm:$0xff]
    %v116 = vld [vmem:[#allocation5] sm:$0xff]
    %v117 = vld [vmem:[#allocation5 + $0x8] sm:$0xff]
    %v118 = vld [vmem:[#allocation5 + $0x10] sm:$0xff]
    %v119 = vld [vmem:[#allocation5 + $0x18] sm:$0xff]
    %v120 = vld [vmem:[#allocation5 + $0x20] sm:$0xff]
    %v121 = vld [vmem:[#allocation5 + $0x28] sm:$0xff]
    %v122 = vld [vmem:[#allocation5 + $0x30] sm:$0xff]
    %v123 = vld [vmem:[#allocation5 + $0x38] sm:$0xff]
    %v124 = vld [vmem:[#allocation5 + $0x40] sm:$0xff]
    %v125 = vld [vmem:[#allocation5 + $0x48] sm:$0xff]
    %v126 = vadd.f32 %v106, %v116
    %v127 = vadd.f32 %v107, %v117
    %v128 = vadd.f32 %v108, %v118
    %v129 = vadd.f32 %v109, %v119
    %v130 = vadd.f32 %v110, %v120
    %v131 = vadd.f32 %v111, %v121
    %v132 = vadd.f32 %v112, %v122
    %v133 = vadd.f32 %v113, %v123
    %v134 = vadd.f32 %v114, %v124
    %v135 = vadd.f32 %v115, %v125
    %v136 = vld [vmem:[#allocation7] sm:$0xf]
    %v137 = vld [vmem:[#allocation7 + $0x4] sm:$0xf]
    %v138 = vld [vmem:[#allocation7 + $0x8] sm:$0xf]
    %v139 = vld [vmem:[#allocation7 + $0xc] sm:$0xf]
    %v140 = vpack.c.bf16 %v107, %v106
    %v141 = vpack.c.bf16 %v109, %v108
    %v142 = vpack.c.bf16 %v111, %v110
    %v143 = vpack.c.bf16 %v113, %v112
    %v144 = vpack.c.bf16 %v115, %v114
    %v145 = vld [vmem:[#allocation8] sm:$0x1]
    %v147 = vlaneseq
    %v148 = vshrl.u32 %v147, 7
    %v149 = vsub.s32 0, %v148
    %v150 = vrot.slane %v145, %v149
    %v156 = vunpack.c.l.b16 %v136
    %v157 = vunpack.c.l.b16 %v137
    %v158 = vunpack.c.l.b16 %v138
    %v159 = vunpack.c.l.b16 %v139
    %v160 = vpack.c.b16 %v157, %v156
    %v161 = vpack.c.b16 %v159, %v158
    %vm164 = vcmask 261120
    %v166 = vsel %vm164, %v140, 0
    %v169 = vsel %vm164, %v141, 0
    %v172 = vsel %vm164, %v142, 0
    %v175 = vsel %vm164, %v143, 0
    %v178 = vsel %vm164, %v144, 0
    %180 = vmatprep.subr.bf16.mxu0 0
    %181 = vmatpush1.bf16.msra.mxu0 %v160
    %182 = vmatprep.subr.bf16.mxu0 0
    %183 = vmatpush1.bf16.msra.mxu0 %v161
    %184 = vmatprep.subr.bf16.mxu0 0
    %185 = vmatpush1.bf16.msra.mxu0 0
    %186 = vmatprep.subr.bf16.mxu0 0
    %187 = vmatpush1.bf16.msra.mxu0 0
    %188 = vmatprep.subr.bf16.mxu0 0
    %189 = vmatpush1.bf16.msra.mxu0 0
    %190 = vmatprep.subr.bf16.mxu0 0
    %191 = vmatpush1.bf16.msra.mxu0 0
    %192 = vmatprep.subr.bf16.mxu0 0
    %193 = vmatpush1.bf16.msra.mxu0 0
    %194 = vmatprep.subr.bf16.mxu0 0
    %195 = vmatpush1.bf16.msra.mxu0 0
    %196 = vmatprep.subr.bf16.mxu0 0
    %197 = vmatpush1.bf16.msra.mxu0 0
    %198 = vmatprep.subr.bf16.mxu0 0
    %199 = vmatpush1.bf16.msra.mxu0 0
    %200 = vmatprep.subr.bf16.mxu0 0
    %201 = vmatpush1.bf16.msra.mxu0 0
    %202 = vmatprep.subr.bf16.mxu0 0
    %203 = vmatpush1.bf16.msra.mxu0 0
    %204 = vmatprep.subr.bf16.mxu0 0
    %205 = vmatpush1.bf16.msra.mxu0 0
    %206 = vmatprep.subr.bf16.mxu0 0
    %207 = vmatpush1.bf16.msra.mxu0 0
    %208 = vmatprep.subr.bf16.mxu0 0
    %209 = vmatpush1.bf16.msra.mxu0 0
    %210 = vmatprep.subr.bf16.mxu0 0
    %211 = vmatpush1.bf16.msra.mxu0 0
    %212 = vmatprep.mubr.bf16.mxu0 0
    %213 = vmatmul.mubr.bf16.gmra.mrb[0].mxu0 %v166
    %v214 = vpop.f32.mrb[0].mxu0
    %v215 = vadd.f32 %v150, %v214
    %v216 = vpop.f32.mrb[0].mxu0
    %v217 = vpop.f32.mrb[0].mxu0
    %v218 = vadd.f32 %v150, %v217
    %v219 = vpop.f32.mrb[0].mxu0
    %220 = vmatprep.mubr.bf16.mxu0 0
    %221 = vmatmul.mubr.bf16.gmra.mrb[0].mxu0 %v169
    %v222 = vpop.f32.mrb[0].mxu0
    %v223 = vadd.f32 %v150, %v222
    %v224 = vpop.f32.mrb[0].mxu0
    %v225 = vpop.f32.mrb[0].mxu0
    %v226 = vadd.f32 %v150, %v225
    %v227 = vpop.f32.mrb[0].mxu0
    %228 = vmatprep.mubr.bf16.mxu0 0
    %229 = vmatmul.mubr.bf16.gmra.mrb[0].mxu0 %v172
    %v230 = vpop.f32.mrb[0].mxu0
    %v231 = vadd.f32 %v150, %v230
    %v232 = vpop.f32.mrb[0].mxu0
    %v233 = vpop.f32.mrb[0].mxu0
    %v234 = vadd.f32 %v150, %v233
    %v235 = vpop.f32.mrb[0].mxu0
    %236 = vmatprep.mubr.bf16.mxu0 0
    %237 = vmatmul.mubr.bf16.gmra.mrb[0].mxu0 %v175
    %v238 = vpop.f32.mrb[0].mxu0
    %v239 = vadd.f32 %v150, %v238
    %v240 = vpop.f32.mrb[0].mxu0
    %v241 = vpop.f32.mrb[0].mxu0
    %v242 = vadd.f32 %v150, %v241
    %v243 = vpop.f32.mrb[0].mxu0
    %244 = vmatprep.mubr.bf16.mxu0 0
    %245 = vmatmul.mubr.bf16.gmra.mrb[0].mxu0 %v178
    %v246 = vpop.f32.mrb[0].mxu0
    %v247 = vadd.f32 %v150, %v246
    %v248 = vpop.f32.mrb[0].mxu0
    %v249 = vpop.f32.mrb[0].mxu0
    %v250 = vadd.f32 %v150, %v249
    %v251 = vpop.f32.mrb[0].mxu0
    %252 = vdwg.mxu0
    %v253 = vpack.c.bf16 %v218, %v215
    %v254 = vpack.c.bf16 %v226, %v223
    %v255 = vpack.c.bf16 %v234, %v231
    %v256 = vpack.c.bf16 %v242, %v239
    %v257 = vpack.c.bf16 %v250, %v247
    %v263 = vunpack.c.l.b16 %v253
    %v264 = vunpack.c.h.b16 %v253
    %v265 = vunpack.c.l.b16 %v254
    %v266 = vunpack.c.h.b16 %v254
    %v267 = vunpack.c.l.b16 %v255
    %v268 = vunpack.c.h.b16 %v255
    %v269 = vunpack.c.l.b16 %v256
    %v270 = vunpack.c.h.b16 %v256
    %v271 = vunpack.c.l.b16 %v257
    %v272 = vunpack.c.h.b16 %v257
    %v273 = vpack.c.b16 %v263, %v263
    %v274 = vpack.c.b16 %v264, %v264
    %v275 = vpack.c.b16 %v265, %v265
    %v276 = vpack.c.b16 %v266, %v266
    %v277 = vpack.c.b16 %v267, %v267
    %v278 = vpack.c.b16 %v268, %v268
    %v279 = vpack.c.b16 %v269, %v269
    %v280 = vpack.c.b16 %v270, %v270
    %v281 = vpack.c.b16 %v271, %v271
    %v282 = vpack.c.b16 %v272, %v272
    %vm293 = vcmask 257024
    %294 = vst.msk [vmem:[#allocation13] sm:$0xf] %vm293, %v273
    %295 = vst.msk [vmem:[#allocation13 + $0x4] sm:$0xf] %vm293, %v274
    %296 = vst.msk [vmem:[#allocation13 + $0x8] sm:$0xf] %vm293, %v275
    %297 = vst.msk [vmem:[#allocation13 + $0xc] sm:$0xf] %vm293, %v276
    %298 = vst.msk [vmem:[#allocation13 + $0x10] sm:$0xf] %vm293, %v277
    %299 = vst.msk [vmem:[#allocation13 + $0x14] sm:$0xf] %vm293, %v278
    %300 = vst.msk [vmem:[#allocation13 + $0x18] sm:$0xf] %vm293, %v279
    %301 = vst.msk [vmem:[#allocation13 + $0x1c] sm:$0xf] %vm293, %v280
    %302 = vst.msk [vmem:[#allocation13 + $0x20] sm:$0xf] %vm293, %v281
    %303 = vst.msk [vmem:[#allocation13 + $0x24] sm:$0xf] %vm293, %v282
    %v304 = vld [vmem:[#allocation10] sm:$0xf]
    %v305 = vld [vmem:[#allocation10 + $0x4] sm:$0xf]
    %v306 = vld [vmem:[#allocation10 + $0x8] sm:$0xf]
    %v307 = vld [vmem:[#allocation10 + $0xc] sm:$0xf]
    %v308 = vpack.c.bf16 %v127, %v126
    %v309 = vpack.c.bf16 %v129, %v128
    %v310 = vpack.c.bf16 %v131, %v130
    %v311 = vpack.c.bf16 %v133, %v132
    %v312 = vpack.c.bf16 %v135, %v134
    %v313 = vld [vmem:[#allocation11] sm:$0x1]
    %v315 = vlaneseq
    %v316 = vshrl.u32 %v315, 7
    %v317 = vsub.s32 0, %v316
    %v318 = vrot.slane %v313, %v317
    %v324 = vunpack.c.l.b16 %v304
    %v325 = vunpack.c.l.b16 %v305
    %v326 = vunpack.c.l.b16 %v306
    %v327 = vunpack.c.l.b16 %v307
    %v328 = vpack.c.b16 %v325, %v324
    %v329 = vpack.c.b16 %v327, %v326
    %v333 = vsel %vm164, %v308, 0
    %v336 = vsel %vm164, %v309, 0
    %v339 = vsel %vm164, %v310, 0
    %v342 = vsel %vm164, %v311, 0
    %v345 = vsel %vm164, %v312, 0
    %347 = vmatprep.subr.bf16.mxu0 0
    %348 = vmatpush1.bf16.msra.mxu0 %v328
    %349 = vmatprep.subr.bf16.mxu0 0
    %350 = vmatpush1.bf16.msra.mxu0 %v329
    %351 = vmatprep.subr.bf16.mxu0 0
    %352 = vmatpush1.bf16.msra.mxu0 0
    %353 = vmatprep.subr.bf16.mxu0 0
    %354 = vmatpush1.bf16.msra.mxu0 0
    %355 = vmatprep.subr.bf16.mxu0 0
    %356 = vmatpush1.bf16.msra.mxu0 0
    %357 = vmatprep.subr.bf16.mxu0 0
    %358 = vmatpush1.bf16.msra.mxu0 0
    %359 = vmatprep.subr.bf16.mxu0 0
    %360 = vmatpush1.bf16.msra.mxu0 0
    %361 = vmatprep.subr.bf16.mxu0 0
    %362 = vmatpush1.bf16.msra.mxu0 0
    %363 = vmatprep.subr.bf16.mxu0 0
    %364 = vmatpush1.bf16.msra.mxu0 0
    %365 = vmatprep.subr.bf16.mxu0 0
    %366 = vmatpush1.bf16.msra.mxu0 0
    %367 = vmatprep.subr.bf16.mxu0 0
    %368 = vmatpush1.bf16.msra.mxu0 0
    %369 = vmatprep.subr.bf16.mxu0 0
    %370 = vmatpush1.bf16.msra.mxu0 0
    %371 = vmatprep.subr.bf16.mxu0 0
    %372 = vmatpush1.bf16.msra.mxu0 0
    %373 = vmatprep.subr.bf16.mxu0 0
    %374 = vmatpush1.bf16.msra.mxu0 0
    %375 = vmatprep.subr.bf16.mxu0 0
    %376 = vmatpush1.bf16.msra.mxu0 0
    %377 = vmatprep.subr.bf16.mxu0 0
    %378 = vmatpush1.bf16.msra.mxu0 0
    %379 = vmatprep.mubr.bf16.mxu0 0
    %380 = vmatmul.mubr.bf16.gmra.mrb[0].mxu0 %v333
    %v381 = vpop.f32.mrb[0].mxu0
    %v382 = vadd.f32 %v318, %v381
    %v383 = vpop.f32.mrb[0].mxu0
    %v384 = vpop.f32.mrb[0].mxu0
    %v385 = vadd.f32 %v318, %v384
    %v386 = vpop.f32.mrb[0].mxu0
    %387 = vmatprep.mubr.bf16.mxu0 0
    %388 = vmatmul.mubr.bf16.gmra.mrb[0].mxu0 %v336
    %v389 = vpop.f32.mrb[0].mxu0
    %v390 = vadd.f32 %v318, %v389
    %v391 = vpop.f32.mrb[0].mxu0
    %v392 = vpop.f32.mrb[0].mxu0
    %v393 = vadd.f32 %v318, %v392
    %v394 = vpop.f32.mrb[0].mxu0
    %395 = vmatprep.mubr.bf16.mxu0 0
    %396 = vmatmul.mubr.bf16.gmra.mrb[0].mxu0 %v339
    %v397 = vpop.f32.mrb[0].mxu0
    %v398 = vadd.f32 %v318, %v397
    %v399 = vpop.f32.mrb[0].mxu0
    %v400 = vpop.f32.mrb[0].mxu0
    %v401 = vadd.f32 %v318, %v400
    %v402 = vpop.f32.mrb[0].mxu0
    %403 = vmatprep.mubr.bf16.mxu0 0
    %404 = vmatmul.mubr.bf16.gmra.mrb[0].mxu0 %v342
    %v405 = vpop.f32.mrb[0].mxu0
    %v406 = vadd.f32 %v318, %v405
    %v407 = vpop.f32.mrb[0].mxu0
    %v408 = vpop.f32.mrb[0].mxu0
    %v409 = vadd.f32 %v318, %v408
    %v410 = vpop.f32.mrb[0].mxu0
    %411 = vmatprep.mubr.bf16.mxu0 0
    %412 = vmatmul.mubr.bf16.gmra.mrb[0].mxu0 %v345
    %v413 = vpop.f32.mrb[0].mxu0
    %v414 = vadd.f32 %v318, %v413
    %v415 = vpop.f32.mrb[0].mxu0
    %v416 = vpop.f32.mrb[0].mxu0
    %v417 = vadd.f32 %v318, %v416
    %v418 = vpop.f32.mrb[0].mxu0
    %419 = vdwg.mxu0
    %vm420 = vcmask 523264
    %421 = vst.msk [vmem:[#allocation14] sm:$0xff] %vm420, %v382
    %422 = vst.msk [vmem:[#allocation14 + $0x8] sm:$0xff] %vm420, %v385
    %423 = vst.msk [vmem:[#allocation14 + $0x10] sm:$0xff] %vm420, %v390
    %424 = vst.msk [vmem:[#allocation14 + $0x18] sm:$0xff] %vm420, %v393
    %425 = vst.msk [vmem:[#allocation14 + $0x20] sm:$0xff] %vm420, %v398
    %426 = vst.msk [vmem:[#allocation14 + $0x28] sm:$0xff] %vm420, %v401
    %427 = vst.msk [vmem:[#allocation14 + $0x30] sm:$0xff] %vm420, %v406
    %428 = vst.msk [vmem:[#allocation14 + $0x38] sm:$0xff] %vm420, %v409
    %429 = vst.msk [vmem:[#allocation14 + $0x40] sm:$0xff] %vm420, %v414
    %430 = vst.msk [vmem:[#allocation14 + $0x48] sm:$0xff] %vm420, %v417
    // Predicated region
    $region50: #{tpu_custom_call.1} parent=1 // pred_check
      _
    $region51: #{tpu_custom_call.1} parent=1 // pred_check_branch
      %432 = sbr.rel (0) target = $region53
    $region52: #{tpu_custom_call.1} parent=1 // pred_region
      %s434 = ssub.s32 640, 640
      %435 = vsyncadd [#allocation4], %s434
      %s436 = sshll.u32 [#allocation13], 4
      %s437 = int_to_ptr.vmem [resolvable:$true] %s436
      %442 = dma.vmem_to_hbm [thread:$0]  %s437, 640, %s6, [#allocation4], 64, 64, 4
    $region53: #{tpu_custom_call.1} parent=1 // pred_fallthru
      _
    // Predicated region
    $region54: #{tpu_custom_call.1} parent=1 // pred_check
      _
    $region55: #{tpu_custom_call.1} parent=1 // pred_check_branch
      %444 = sbr.rel (0) target = $region57
    $region56: #{tpu_custom_call.1} parent=1 // pred_region
      %s446 = ssub.s32 1280, 1280
      %447 = vsyncadd [#allocation15], %s446
      %s448 = sshll.u32 [#allocation14], 4
      %s449 = int_to_ptr.vmem [resolvable:$true] %s448
      %454 = dma.vmem_to_hbm [thread:$0]  %s449, 1280, %s7, [#allocation15], 128, 128, 8
    $region57: #{tpu_custom_call.1} parent=1 // pred_fallthru
      _
    // Predicated region
    $region58: #{tpu_custom_call.1} parent=1 // pred_check
      _
    $region59: #{tpu_custom_call.1} parent=1 // pred_check_branch
      %456 = sbr.rel (0) target = $region61
    $region60: #{tpu_custom_call.1} parent=1 // pred_region
      %457 = dma.done [#allocation4], 640
    $region61: #{tpu_custom_call.1} parent=1 // pred_fallthru
      _
    // Predicated region
    $region62: #{tpu_custom_call.1} parent=1 // pred_check
      _
    $region63: #{tpu_custom_call.1} parent=1 // pred_check_branch
      %459 = sbr.rel (0) target = $region65
    $region64: #{tpu_custom_call.1} parent=1 // pred_region
      %460 = dma.done [#allocation15], 1280
    $region65: #{tpu_custom_call.1} parent=1 // pred_fallthru
      _
    %461 = vsyncpa [#allocation3], 1
    %462 = vsyncpa [#allocation6], 1
    %463 = vsyncpa [#allocation9], 1
    %464 = vsyncpa [#allocation12], 1
    %465 = vsyncpa [#allocation4], 1
    %466 = vsyncpa [#allocation15], 1

</llo_original>
